<compile_context>
chip_gen: v6e
topology: v6e:2x2x1
jax: 0.10.0
libtpu: 0.0.40
codegen_flags: <defaults>
</compile_context>

<pallas_src>
import jax
import jax.numpy as jnp
from jax.experimental import pallas as pl
from jax.experimental.pallas import tpu as pltpu


def _mlp_kernel(x_ref,
                w1_ref, b1_ref,
                w2_ref, b2_ref,
                w3_ref, b3_ref,
                w4_ref, b4_ref,
                w5_ref, b5_ref,
                o_ref):
    """x_ref: [TB, S, C]; o_ref: [TB, P, C]; W_i: [out_i, in_i]; b_i: [out_i, 1]."""
    # Weights/biases are tiny (<64 KiB total); their BlockSpecs are
    # grid-invariant so Pallas keeps them resident in VMEM.  Load once here.
    w1 = w1_ref[...]; b1 = b1_ref[...]
    w2 = w2_ref[...]; b2 = b2_ref[...]
    w3 = w3_ref[...]; b3 = b3_ref[...]
    w4 = w4_ref[...]; b4 = b4_ref[...]
    w5 = w5_ref[...]; b5 = b5_ref[...]

    tb = x_ref.shape[0]
    for t in range(tb):  # static (unrolled) loop over the batch tile
        h = x_ref[t]     # [S, C]  time on sublanes, channels on lanes
        h = jnp.maximum(jnp.dot(w1, h, preferred_element_type=jnp.float32) + b1, 0.0)
        h = jnp.maximum(jnp.dot(w2, h, preferred_element_type=jnp.float32) + b2, 0.0)
        h = jnp.maximum(jnp.dot(w3, h, preferred_element_type=jnp.float32) + b3, 0.0)
        h = jnp.maximum(jnp.dot(w4, h, preferred_element_type=jnp.float32) + b4, 0.0)
        h = jnp.dot(w5, h, preferred_element_type=jnp.float32) + b5      # [P, C]
        o_ref[t] = h.astype(o_ref.dtype)


def mlp_v2_forward(x, params, *, batch_tile=8):
    """x: [B, seq_len, C] float32 -> [B, pred_len, C] float32."""
    B, S, C = x.shape
    (w1, b1), (w2, b2), (w3, b3), (w4, b4), (w5, b5) = params
    P = w5.shape[0]

    TB = max(1, min(batch_tile, B))
    grid = (pl.cdiv(B, TB),)

    def batch_block(shape):
        # Batch-tiled block; last two dims equal the full array dims, so the
        # (8,128) divisibility rule is satisfied for any S, C, P.
        return pl.BlockSpec(shape, lambda i: (i, 0, 0))

    def resident(shape):
        # Grid-invariant full block: same (0, 0) index every step -> stays in VMEM.
        return pl.BlockSpec(shape, lambda i: (0, 0))

    out = pl.pallas_call(
        _mlp_kernel,
        out_shape=jax.ShapeDtypeStruct((B, P, C), jnp.float32),
        grid_spec=pltpu.PrefetchScalarGridSpec(
            num_scalar_prefetch=0,
            grid=grid,
            in_specs=[
                batch_block((TB, S, C)),
                resident(w1.shape), resident(b1.shape),
                resident(w2.shape), resident(b2.shape),
                resident(w3.shape), resident(b3.shape),
                resident(w4.shape), resident(b4.shape),
                resident(w5.shape), resident(b5.shape),
            ],
            out_specs=batch_block((TB, P, C)),
        ),
        compiler_params=pltpu.CompilerParams(
            dimension_semantics=("parallel",),
        ),
    )(x, w1, b1, w2, b2, w3, b3, w4, b4, w5, b5)
    return out


def init_params(key, seq_len, pred_len):
    """nn.Linear-style params in PyTorch layout: W [out, in], b [out, 1]."""
    dims = [seq_len, 128, 64, 32, 16, pred_len]
    params = []
    for i in range(5):
        fan_in, fan_out = dims[i], dims[i + 1]
        key, kw, kb = jax.random.split(key, 3)
        bound = 1.0 / jnp.sqrt(fan_in)
        w = jax.random.uniform(kw, (fan_out, fan_in), jnp.float32, -bound, bound)
        b = jax.random.uniform(kb, (fan_out, 1), jnp.float32, -bound, bound)
        params.append((w, b))
    return params


def reference_forward(x, params):
    """Plain-JAX replica of the PyTorch forward for a sanity check."""
    h = jnp.transpose(x, (0, 2, 1))  # [B, C, S]
    for i, (w, b) in enumerate(params):
        h = h @ w.T + b[:, 0]
        if i < 4:
            h = jnp.maximum(h, 0.0)
    return jnp.transpose(h, (0, 2, 1))  # [B, P, C]


if __name__ == "__main__":
    B, seq_len, enc_in, pred_len = 2, 8, 4, 8

    key = jax.random.PRNGKey(0)
    key, kx = jax.random.split(key)
    x = jax.random.normal(kx, (B, seq_len, enc_in), jnp.float32)

    params = init_params(key, seq_len, pred_len)

    out = jax.block_until_ready(mlp_v2_forward(x, params))

    ref = reference_forward(x, params)
    assert out.shape == (B, pred_len, enc_in), out.shape
    max_err = float(jnp.max(jnp.abs(out - ref)))
    assert max_err < 1e-4, f"mismatch vs reference: max_abs_err={max_err}"

    print("KERNEL_OK")
</pallas_src>

<mosaic_0001>
module attributes {stable_mosaic.version = 11 : i64} {
  func.func @_mlp_kernel(%arg0: i32, %arg1: memref<2x8x4xf32, #tpu.memory_space<vmem>>, %arg2: memref<128x8xf32, #tpu.memory_space<vmem>>, %arg3: memref<128x1xf32, #tpu.memory_space<vmem>>, %arg4: memref<64x128xf32, #tpu.memory_space<vmem>>, %arg5: memref<64x1xf32, #tpu.memory_space<vmem>>, %arg6: memref<32x64xf32, #tpu.memory_space<vmem>>, %arg7: memref<32x1xf32, #tpu.memory_space<vmem>>, %arg8: memref<16x32xf32, #tpu.memory_space<vmem>>, %arg9: memref<16x1xf32, #tpu.memory_space<vmem>>, %arg10: memref<8x16xf32, #tpu.memory_space<vmem>>, %arg11: memref<8x1xf32, #tpu.memory_space<vmem>>, %arg12: memref<2x8x4xf32, #tpu.memory_space<vmem>>) attributes {dimension_semantics = [#tpu.dimension_semantics<parallel>], iteration_bounds = array<i64: 1>, scalar_prefetch = 0 : i64, scratch_operands = 0 : i64, tpu.core_type = #tpu.core_type<tc>, window_params = [{transform_indices = @transform_0, window_bounds = array<i64: 2, 8, 4>}, {pipeline_mode = #tpu.pipeline_mode<synchronous>, transform_indices = @transform_1, window_bounds = array<i64: 128, 8>}, {pipeline_mode = #tpu.pipeline_mode<synchronous>, transform_indices = @transform_2, window_bounds = array<i64: 128, 1>}, {pipeline_mode = #tpu.pipeline_mode<synchronous>, transform_indices = @transform_3, window_bounds = array<i64: 64, 128>}, {pipeline_mode = #tpu.pipeline_mode<synchronous>, transform_indices = @transform_4, window_bounds = array<i64: 64, 1>}, {pipeline_mode = #tpu.pipeline_mode<synchronous>, transform_indices = @transform_5, window_bounds = array<i64: 32, 64>}, {pipeline_mode = #tpu.pipeline_mode<synchronous>, transform_indices = @transform_6, window_bounds = array<i64: 32, 1>}, {pipeline_mode = #tpu.pipeline_mode<synchronous>, transform_indices = @transform_7, window_bounds = array<i64: 16, 32>}, {pipeline_mode = #tpu.pipeline_mode<synchronous>, transform_indices = @transform_8, window_bounds = array<i64: 16, 1>}, {pipeline_mode = #tpu.pipeline_mode<synchronous>, transform_indices = @transform_9, window_bounds = array<i64: 8, 16>}, {pipeline_mode = #tpu.pipeline_mode<synchronous>, transform_indices = @transform_10, window_bounds = array<i64: 8, 1>}, {transform_indices = @transform_11, window_bounds = array<i64: 2, 8, 4>}]} {
    %c0 = arith.constant 0 : index
    %c0_0 = arith.constant 0 : index
    %0 = vector.load %arg2[%c0, %c0_0] : memref<128x8xf32, #tpu.memory_space<vmem>>, vector<128x8xf32>
    %c0_1 = arith.constant 0 : index
    %c0_2 = arith.constant 0 : index
    %1 = vector.load %arg3[%c0_1, %c0_2] : memref<128x1xf32, #tpu.memory_space<vmem>>, vector<128x1xf32>
    %c0_3 = arith.constant 0 : index
    %c0_4 = arith.constant 0 : index
    %2 = vector.load %arg4[%c0_3, %c0_4] : memref<64x128xf32, #tpu.memory_space<vmem>>, vector<64x128xf32>
    %c0_5 = arith.constant 0 : index
    %c0_6 = arith.constant 0 : index
    %3 = vector.load %arg5[%c0_5, %c0_6] : memref<64x1xf32, #tpu.memory_space<vmem>>, vector<64x1xf32>
    %c0_7 = arith.constant 0 : index
    %c0_8 = arith.constant 0 : index
    %4 = vector.load %arg6[%c0_7, %c0_8] : memref<32x64xf32, #tpu.memory_space<vmem>>, vector<32x64xf32>
    %c0_9 = arith.constant 0 : index
    %c0_10 = arith.constant 0 : index
    %5 = vector.load %arg7[%c0_9, %c0_10] : memref<32x1xf32, #tpu.memory_space<vmem>>, vector<32x1xf32>
    %c0_11 = arith.constant 0 : index
    %c0_12 = arith.constant 0 : index
    %6 = vector.load %arg8[%c0_11, %c0_12] : memref<16x32xf32, #tpu.memory_space<vmem>>, vector<16x32xf32>
    %c0_13 = arith.constant 0 : index
    %c0_14 = arith.constant 0 : index
    %7 = vector.load %arg9[%c0_13, %c0_14] : memref<16x1xf32, #tpu.memory_space<vmem>>, vector<16x1xf32>
    %c0_15 = arith.constant 0 : index
    %c0_16 = arith.constant 0 : index
    %8 = vector.load %arg10[%c0_15, %c0_16] : memref<8x16xf32, #tpu.memory_space<vmem>>, vector<8x16xf32>
    %c0_17 = arith.constant 0 : index
    %c0_18 = arith.constant 0 : index
    %9 = vector.load %arg11[%c0_17, %c0_18] : memref<8x1xf32, #tpu.memory_space<vmem>>, vector<8x1xf32>
    %c0_19 = arith.constant 0 : index
    %c0_20 = arith.constant 0 : index
    %c0_21 = arith.constant 0 : index
    %10 = vector.load %arg1[%c0_19, %c0_20, %c0_21] : memref<2x8x4xf32, #tpu.memory_space<vmem>>, vector<1x8x4xf32>
    %11 = vector.shape_cast %10 : vector<1x8x4xf32> to vector<8x4xf32>
    %cst = arith.constant dense<0.000000e+00> : vector<128x4xf32>
    %12 = tpu.matmul %0, %11, %cst {dimension_numbers = #tpu.dot_dimension_numbers<[1], [0], [0], [1], [0, 0, 1, 1], [], []>} : vector<128x8xf32>, vector<8x4xf32>, vector<128x4xf32> -> vector<128x4xf32>
    %13 = vector.broadcast %1 : vector<128x1xf32> to vector<128x4xf32>
    %14 = arith.addf %12, %13 : vector<128x4xf32>
    %cst_22 = arith.constant 0.000000e+00 : f32
    %15 = vector.broadcast %cst_22 : f32 to vector<128x4xf32>
    %16 = arith.maximumf %14, %15 : vector<128x4xf32>
    %cst_23 = arith.constant dense<0.000000e+00> : vector<64x4xf32>
    %17 = tpu.matmul %2, %16, %cst_23 {dimension_numbers = #tpu.dot_dimension_numbers<[1], [0], [0], [1], [0, 0, 1, 1], [], []>} : vector<64x128xf32>, vector<128x4xf32>, vector<64x4xf32> -> vector<64x4xf32>
    %18 = vector.broadcast %3 : vector<64x1xf32> to vector<64x4xf32>
    %19 = arith.addf %17, %18 : vector<64x4xf32>
    %cst_24 = arith.constant 0.000000e+00 : f32
    %20 = vector.broadcast %cst_24 : f32 to vector<64x4xf32>
    %21 = arith.maximumf %19, %20 : vector<64x4xf32>
    %cst_25 = arith.constant dense<0.000000e+00> : vector<32x4xf32>
    %22 = tpu.matmul %4, %21, %cst_25 {dimension_numbers = #tpu.dot_dimension_numbers<[1], [0], [0], [1], [0, 0, 1, 1], [], []>} : vector<32x64xf32>, vector<64x4xf32>, vector<32x4xf32> -> vector<32x4xf32>
    %23 = vector.broadcast %5 : vector<32x1xf32> to vector<32x4xf32>
    %24 = arith.addf %22, %23 : vector<32x4xf32>
    %cst_26 = arith.constant 0.000000e+00 : f32
    %25 = vector.broadcast %cst_26 : f32 to vector<32x4xf32>
    %26 = arith.maximumf %24, %25 : vector<32x4xf32>
    %cst_27 = arith.constant dense<0.000000e+00> : vector<16x4xf32>
    %27 = tpu.matmul %6, %26, %cst_27 {dimension_numbers = #tpu.dot_dimension_numbers<[1], [0], [0], [1], [0, 0, 1, 1], [], []>} : vector<16x32xf32>, vector<32x4xf32>, vector<16x4xf32> -> vector<16x4xf32>
    %28 = vector.broadcast %7 : vector<16x1xf32> to vector<16x4xf32>
    %29 = arith.addf %27, %28 : vector<16x4xf32>
    %cst_28 = arith.constant 0.000000e+00 : f32
    %30 = vector.broadcast %cst_28 : f32 to vector<16x4xf32>
    %31 = arith.maximumf %29, %30 : vector<16x4xf32>
    %cst_29 = arith.constant dense<0.000000e+00> : vector<8x4xf32>
    %32 = tpu.matmul %8, %31, %cst_29 {dimension_numbers = #tpu.dot_dimension_numbers<[1], [0], [0], [1], [0, 0, 1, 1], [], []>} : vector<8x16xf32>, vector<16x4xf32>, vector<8x4xf32> -> vector<8x4xf32>
    %33 = vector.broadcast %9 : vector<8x1xf32> to vector<8x4xf32>
    %34 = arith.addf %32, %33 : vector<8x4xf32>
    %c0_30 = arith.constant 0 : index
    %c0_31 = arith.constant 0 : index
    %c0_32 = arith.constant 0 : index
    %35 = vector.load %arg12[%c0_30, %c0_31, %c0_32] : memref<2x8x4xf32, #tpu.memory_space<vmem>>, vector<1x8x4xf32>
    %36 = vector.shape_cast %35 : vector<1x8x4xf32> to vector<8x4xf32>
    %37 = vector.shape_cast %34 : vector<8x4xf32> to vector<1x8x4xf32>
    tpu.vector_store %arg12[%c0_30, %c0_31, %c0_32], %37 {strides = array<i32>} : memref<2x8x4xf32, #tpu.memory_space<vmem>>, vector<1x8x4xf32>,
    %c1 = arith.constant 1 : index
    %c0_33 = arith.constant 0 : index
    %c0_34 = arith.constant 0 : index
    %38 = vector.load %arg1[%c1, %c0_33, %c0_34] : memref<2x8x4xf32, #tpu.memory_space<vmem>>, vector<1x8x4xf32>
    %39 = vector.shape_cast %38 : vector<1x8x4xf32> to vector<8x4xf32>
    %cst_35 = arith.constant dense<0.000000e+00> : vector<128x4xf32>
    %40 = tpu.matmul %0, %39, %cst_35 {dimension_numbers = #tpu.dot_dimension_numbers<[1], [0], [0], [1], [0, 0, 1, 1], [], []>} : vector<128x8xf32>, vector<8x4xf32>, vector<128x4xf32> -> vector<128x4xf32>
    %41 = vector.broadcast %1 : vector<128x1xf32> to vector<128x4xf32>
    %42 = arith.addf %40, %41 : vector<128x4xf32>
    %cst_36 = arith.constant 0.000000e+00 : f32
    %43 = vector.broadcast %cst_36 : f32 to vector<128x4xf32>
    %44 = arith.maximumf %42, %43 : vector<128x4xf32>
    %cst_37 = arith.constant dense<0.000000e+00> : vector<64x4xf32>
    %45 = tpu.matmul %2, %44, %cst_37 {dimension_numbers = #tpu.dot_dimension_numbers<[1], [0], [0], [1], [0, 0, 1, 1], [], []>} : vector<64x128xf32>, vector<128x4xf32>, vector<64x4xf32> -> vector<64x4xf32>
    %46 = vector.broadcast %3 : vector<64x1xf32> to vector<64x4xf32>
    %47 = arith.addf %45, %46 : vector<64x4xf32>
    %cst_38 = arith.constant 0.000000e+00 : f32
    %48 = vector.broadcast %cst_38 : f32 to vector<64x4xf32>
    %49 = arith.maximumf %47, %48 : vector<64x4xf32>
    %cst_39 = arith.constant dense<0.000000e+00> : vector<32x4xf32>
    %50 = tpu.matmul %4, %49, %cst_39 {dimension_numbers = #tpu.dot_dimension_numbers<[1], [0], [0], [1], [0, 0, 1, 1], [], []>} : vector<32x64xf32>, vector<64x4xf32>, vector<32x4xf32> -> vector<32x4xf32>
    %51 = vector.broadcast %5 : vector<32x1xf32> to vector<32x4xf32>
    %52 = arith.addf %50, %51 : vector<32x4xf32>
    %cst_40 = arith.constant 0.000000e+00 : f32
    %53 = vector.broadcast %cst_40 : f32 to vector<32x4xf32>
    %54 = arith.maximumf %52, %53 : vector<32x4xf32>
    %cst_41 = arith.constant dense<0.000000e+00> : vector<16x4xf32>
    %55 = tpu.matmul %6, %54, %cst_41 {dimension_numbers = #tpu.dot_dimension_numbers<[1], [0], [0], [1], [0, 0, 1, 1], [], []>} : vector<16x32xf32>, vector<32x4xf32>, vector<16x4xf32> -> vector<16x4xf32>
    %56 = vector.broadcast %7 : vector<16x1xf32> to vector<16x4xf32>
    %57 = arith.addf %55, %56 : vector<16x4xf32>
    %cst_42 = arith.constant 0.000000e+00 : f32
    %58 = vector.broadcast %cst_42 : f32 to vector<16x4xf32>
    %59 = arith.maximumf %57, %58 : vector<16x4xf32>
    %cst_43 = arith.constant dense<0.000000e+00> : vector<8x4xf32>
    %60 = tpu.matmul %8, %59, %cst_43 {dimension_numbers = #tpu.dot_dimension_numbers<[1], [0], [0], [1], [0, 0, 1, 1], [], []>} : vector<8x16xf32>, vector<16x4xf32>, vector<8x4xf32> -> vector<8x4xf32>
    %61 = vector.broadcast %9 : vector<8x1xf32> to vector<8x4xf32>
    %62 = arith.addf %60, %61 : vector<8x4xf32>
    %c1_44 = arith.constant 1 : index
    %c0_45 = arith.constant 0 : index
    %c0_46 = arith.constant 0 : index
    %63 = vector.load %arg12[%c1_44, %c0_45, %c0_46] : memref<2x8x4xf32, #tpu.memory_space<vmem>>, vector<1x8x4xf32>
    %64 = vector.shape_cast %63 : vector<1x8x4xf32> to vector<8x4xf32>
    %65 = vector.shape_cast %62 : vector<8x4xf32> to vector<1x8x4xf32>
    tpu.vector_store %arg12[%c1_44, %c0_45, %c0_46], %65 {strides = array<i32>} : memref<2x8x4xf32, #tpu.memory_space<vmem>>, vector<1x8x4xf32>,
    return
  }
  func.func @transform_0(%arg0: i32) -> (i32, i32, i32) {
    %c0_i32 = arith.constant 0 : i32
    %c0_i32_0 = arith.constant 0 : i32
    %c0_i32_1 = arith.constant 0 : i32
    return %arg0, %c0_i32, %c0_i32_0 : i32, i32, i32
  }
  func.func @transform_1(%arg0: i32) -> (i32, i32) {
    %c0_i32 = arith.constant 0 : i32
    %c0_i32_0 = arith.constant 0 : i32
    %c0_i32_1 = arith.constant 0 : i32
    return %c0_i32, %c0_i32_0 : i32, i32
  }
  func.func @transform_2(%arg0: i32) -> (i32, i32) {
    %c0_i32 = arith.constant 0 : i32
    %c0_i32_0 = arith.constant 0 : i32
    %c0_i32_1 = arith.constant 0 : i32
    return %c0_i32, %c0_i32_0 : i32, i32
  }
  func.func @transform_3(%arg0: i32) -> (i32, i32) {
    %c0_i32 = arith.constant 0 : i32
    %c0_i32_0 = arith.constant 0 : i32
    %c0_i32_1 = arith.constant 0 : i32
    return %c0_i32, %c0_i32_0 : i32, i32
  }
  func.func @transform_4(%arg0: i32) -> (i32, i32) {
    %c0_i32 = arith.constant 0 : i32
    %c0_i32_0 = arith.constant 0 : i32
    %c0_i32_1 = arith.constant 0 : i32
    return %c0_i32, %c0_i32_0 : i32, i32
  }
  func.func @transform_5(%arg0: i32) -> (i32, i32) {
    %c0_i32 = arith.constant 0 : i32
    %c0_i32_0 = arith.constant 0 : i32
    %c0_i32_1 = arith.constant 0 : i32
    return %c0_i32, %c0_i32_0 : i32, i32
  }
  func.func @transform_6(%arg0: i32) -> (i32, i32) {
    %c0_i32 = arith.constant 0 : i32
    %c0_i32_0 = arith.constant 0 : i32
    %c0_i32_1 = arith.constant 0 : i32
    return %c0_i32, %c0_i32_0 : i32, i32
  }
  func.func @transform_7(%arg0: i32) -> (i32, i32) {
    %c0_i32 = arith.constant 0 : i32
    %c0_i32_0 = arith.constant 0 : i32
    %c0_i32_1 = arith.constant 0 : i32
    return %c0_i32, %c0_i32_0 : i32, i32
  }
  func.func @transform_8(%arg0: i32) -> (i32, i32) {
    %c0_i32 = arith.constant 0 : i32
    %c0_i32_0 = arith.constant 0 : i32
    %c0_i32_1 = arith.constant 0 : i32
    return %c0_i32, %c0_i32_0 : i32, i32
  }
  func.func @transform_9(%arg0: i32) -> (i32, i32) {
    %c0_i32 = arith.constant 0 : i32
    %c0_i32_0 = arith.constant 0 : i32
    %c0_i32_1 = arith.constant 0 : i32
    return %c0_i32, %c0_i32_0 : i32, i32
  }
  func.func @transform_10(%arg0: i32) -> (i32, i32) {
    %c0_i32 = arith.constant 0 : i32
    %c0_i32_0 = arith.constant 0 : i32
    %c0_i32_1 = arith.constant 0 : i32
    return %c0_i32, %c0_i32_0 : i32, i32
  }
  func.func @transform_11(%arg0: i32) -> (i32, i32, i32) {
    %c0_i32 = arith.constant 0 : i32
    %c0_i32_0 = arith.constant 0 : i32
    %c0_i32_1 = arith.constant 0 : i32
    return %arg0, %c0_i32, %c0_i32_0 : i32, i32, i32
  }
}

</mosaic_0001>

<llo_original>
// kernel: tpu_custom_call.1
$region0: #{tpu_custom_call.1}
  #allocation0 [shape = 'u32[]', space=smem, size = 0x4, offset = 0x4, fixed_abs, tag = 'smem constant byte address 0x4 - core index']
  #allocation1 [shape = 'u32[144,128]{1,0:T(1,128)}', space=vmem, size = 0x12000, scoped, tag = 'internal scratch']
  %s0 = inlined_call_operand.vmem [shape: f32[2,8,4], index: 0, kind: input, shape index: {}]
  %s1 = inlined_call_operand.vmem [shape: f32[128,8], index: 1, kind: input, shape index: {}]
  %s2 = inlined_call_operand.vmem [shape: f32[128,1], index: 2, kind: input, shape index: {}]
  %s3 = inlined_call_operand.vmem [shape: f32[64,128], index: 3, kind: input, shape index: {}]
  %s4 = inlined_call_operand.vmem [shape: f32[64,1], index: 4, kind: input, shape index: {}]
  %s5 = inlined_call_operand.vmem [shape: f32[32,64], index: 5, kind: input, shape index: {}]
  %s6 = inlined_call_operand.vmem [shape: f32[32,1], index: 6, kind: input, shape index: {}]
  %s7 = inlined_call_operand.vmem [shape: f32[16,32], index: 7, kind: input, shape index: {}]
  %s8 = inlined_call_operand.vmem [shape: f32[16,1], index: 8, kind: input, shape index: {}]
  %s9 = inlined_call_operand.vmem [shape: f32[8,16], index: 9, kind: input, shape index: {}]
  %s10 = inlined_call_operand.vmem [shape: f32[8,1], index: 10, kind: input, shape index: {}]
  %s11 = inlined_call_operand.vmem [shape: f32[2,8,4], index: 11, kind: output, shape index: {}]
  %s12 = sld [smem:[#allocation0]]
  $region54: #{tpu_custom_call.1} parent=0
    _
  %s14 = ssub.s32 1, %s12
  %s15 = scalar_select 0, %s14, %s12
  // Predicated region
  $region2: #{tpu_custom_call.1} parent=0 // pred_check
    _
  $region3: #{tpu_custom_call.1} parent=0 // pred_check_branch
    %17 = sbr.rel (0) target = $region5
  $region4: #{tpu_custom_call.1} parent=0 // pred_region
    _
  $region5: #{tpu_custom_call.1} parent=0 // pred_fallthru
    _
  // Predicated region
  $region6: #{tpu_custom_call.1} parent=0 // pred_check
    _
  $region7: #{tpu_custom_call.1} parent=0 // pred_check_branch
    %19 = sbr.rel (0) target = $region9
  $region8: #{tpu_custom_call.1} parent=0 // pred_region
    _
  $region9: #{tpu_custom_call.1} parent=0 // pred_fallthru
    _
  // Predicated region
  $region10: #{tpu_custom_call.1} parent=0 // pred_check
    _
  $region11: #{tpu_custom_call.1} parent=0 // pred_check_branch
    %21 = sbr.rel (0) target = $region13
  $region12: #{tpu_custom_call.1} parent=0 // pred_region
    _
  $region13: #{tpu_custom_call.1} parent=0 // pred_fallthru
    _
  // Predicated region
  $region14: #{tpu_custom_call.1} parent=0 // pred_check
    _
  $region15: #{tpu_custom_call.1} parent=0 // pred_check_branch
    %23 = sbr.rel (0) target = $region17
  $region16: #{tpu_custom_call.1} parent=0 // pred_region
    _
  $region17: #{tpu_custom_call.1} parent=0 // pred_fallthru
    _
  // Predicated region
  $region18: #{tpu_custom_call.1} parent=0 // pred_check
    _
  $region19: #{tpu_custom_call.1} parent=0 // pred_check_branch
    %25 = sbr.rel (0) target = $region21
  $region20: #{tpu_custom_call.1} parent=0 // pred_region
    _
  $region21: #{tpu_custom_call.1} parent=0 // pred_fallthru
    _
  // Predicated region
  $region22: #{tpu_custom_call.1} parent=0 // pred_check
    _
  $region23: #{tpu_custom_call.1} parent=0 // pred_check_branch
    %27 = sbr.rel (0) target = $region25
  $region24: #{tpu_custom_call.1} parent=0 // pred_region
    _
  $region25: #{tpu_custom_call.1} parent=0 // pred_fallthru
    _
  // Predicated region
  $region26: #{tpu_custom_call.1} parent=0 // pred_check
    _
  $region27: #{tpu_custom_call.1} parent=0 // pred_check_branch
    %29 = sbr.rel (0) target = $region29
  $region28: #{tpu_custom_call.1} parent=0 // pred_region
    _
  $region29: #{tpu_custom_call.1} parent=0 // pred_fallthru
    _
  // Predicated region
  $region30: #{tpu_custom_call.1} parent=0 // pred_check
    _
  $region31: #{tpu_custom_call.1} parent=0 // pred_check_branch
    %31 = sbr.rel (0) target = $region33
  $region32: #{tpu_custom_call.1} parent=0 // pred_region
    _
  $region33: #{tpu_custom_call.1} parent=0 // pred_fallthru
    _
  // Predicated region
  $region34: #{tpu_custom_call.1} parent=0 // pred_check
    _
  $region35: #{tpu_custom_call.1} parent=0 // pred_check_branch
    %33 = sbr.rel (0) target = $region37
  $region36: #{tpu_custom_call.1} parent=0 // pred_region
    _
  $region37: #{tpu_custom_call.1} parent=0 // pred_fallthru
    _
  // Predicated region
  $region38: #{tpu_custom_call.1} parent=0 // pred_check
    _
  $region39: #{tpu_custom_call.1} parent=0 // pred_check_branch
    %35 = sbr.rel (0) target = $region41
  $region40: #{tpu_custom_call.1} parent=0 // pred_region
    _
  $region41: #{tpu_custom_call.1} parent=0 // pred_fallthru
    _
  // Predicated region
  $region42: #{tpu_custom_call.1} parent=0 // pred_check
    _
  $region43: #{tpu_custom_call.1} parent=0 // pred_check_branch
    %37 = sbr.rel (0) target = $region45
  $region44: #{tpu_custom_call.1} parent=0 // pred_region
    _
  $region45: #{tpu_custom_call.1} parent=0 // pred_fallthru
    _
  %v38 = vld [vmem:[%s1] sm:$0xff]
  %v39 = vld [vmem:[%s1 + $0x8] sm:$0xff]
  %v40 = vld [vmem:[%s1 + $0x10] sm:$0xff]
  %v41 = vld [vmem:[%s1 + $0x18] sm:$0xff]
  %v42 = vld [vmem:[%s1 + $0x20] sm:$0xff]
  %v43 = vld [vmem:[%s1 + $0x28] sm:$0xff]
  %v44 = vld [vmem:[%s1 + $0x30] sm:$0xff]
  %v45 = vld [vmem:[%s1 + $0x38] sm:$0xff]
  %v46 = vld [vmem:[%s1 + $0x40] sm:$0xff]
  %v47 = vld [vmem:[%s1 + $0x48] sm:$0xff]
  %v48 = vld [vmem:[%s1 + $0x50] sm:$0xff]
  %v49 = vld [vmem:[%s1 + $0x58] sm:$0xff]
  %v50 = vld [vmem:[%s1 + $0x60] sm:$0xff]
  %v51 = vld [vmem:[%s1 + $0x68] sm:$0xff]
  %v52 = vld [vmem:[%s1 + $0x70] sm:$0xff]
  %v53 = vld [vmem:[%s1 + $0x78] sm:$0xff]
  %v54 = vld [vmem:[%s2] sm:$0xff]
  %v55 = vld [vmem:[%s2 + $0x8] sm:$0xff]
  %v56 = vld [vmem:[%s2 + $0x10] sm:$0xff]
  %v57 = vld [vmem:[%s2 + $0x18] sm:$0xff]
  %v58 = vld [vmem:[%s2 + $0x20] sm:$0xff]
  %v59 = vld [vmem:[%s2 + $0x28] sm:$0xff]
  %v60 = vld [vmem:[%s2 + $0x30] sm:$0xff]
  %v61 = vld [vmem:[%s2 + $0x38] sm:$0xff]
  %v62 = vld [vmem:[%s2 + $0x40] sm:$0xff]
  %v63 = vld [vmem:[%s2 + $0x48] sm:$0xff]
  %v64 = vld [vmem:[%s2 + $0x50] sm:$0xff]
  %v65 = vld [vmem:[%s2 + $0x58] sm:$0xff]
  %v66 = vld [vmem:[%s2 + $0x60] sm:$0xff]
  %v67 = vld [vmem:[%s2 + $0x68] sm:$0xff]
  %v68 = vld [vmem:[%s2 + $0x70] sm:$0xff]
  %v69 = vld [vmem:[%s2 + $0x78] sm:$0xff]
  %v70 = vld [vmem:[%s3] sm:$0xff]
  %v71 = vld [vmem:[%s3 + $0x8] sm:$0xff]
  %v72 = vld [vmem:[%s3 + $0x10] sm:$0xff]
  %v73 = vld [vmem:[%s3 + $0x18] sm:$0xff]
  %v74 = vld [vmem:[%s3 + $0x20] sm:$0xff]
  %v75 = vld [vmem:[%s3 + $0x28] sm:$0xff]
  %v76 = vld [vmem:[%s3 + $0x30] sm:$0xff]
  %v77 = vld [vmem:[%s3 + $0x38] sm:$0xff]
  %v78 = vld [vmem:[%s4] sm:$0xff]
  %v79 = vld [vmem:[%s4 + $0x8] sm:$0xff]
  %v80 = vld [vmem:[%s4 + $0x10] sm:$0xff]
  %v81 = vld [vmem:[%s4 + $0x18] sm:$0xff]
  %v82 = vld [vmem:[%s4 + $0x20] sm:$0xff]
  %v83 = vld [vmem:[%s4 + $0x28] sm:$0xff]
  %v84 = vld [vmem:[%s4 + $0x30] sm:$0xff]
  %v85 = vld [vmem:[%s4 + $0x38] sm:$0xff]
  %v86 = vld [vmem:[%s5] sm:$0xff]
  %v87 = vld [vmem:[%s5 + $0x8] sm:$0xff]
  %v88 = vld [vmem:[%s5 + $0x10] sm:$0xff]
  %v89 = vld [vmem:[%s5 + $0x18] sm:$0xff]
  %v90 = vld [vmem:[%s6] sm:$0xff]
  %v91 = vld [vmem:[%s6 + $0x8] sm:$0xff]
  %v92 = vld [vmem:[%s6 + $0x10] sm:$0xff]
  %v93 = vld [vmem:[%s6 + $0x18] sm:$0xff]
  %v94 = vld [vmem:[%s7] sm:$0xff]
  %v95 = vld [vmem:[%s7 + $0x8] sm:$0xff]
  %v96 = vld [vmem:[%s8] sm:$0xff]
  %v97 = vld [vmem:[%s8 + $0x8] sm:$0xff]
  %v98 = vld [vmem:[%s9] sm:$0xff]
  %v99 = vld [vmem:[%s10] sm:$0xff]
  %v100 = vld [vmem:[%s0] sm:$0xff]
  %102 = vset.pattern.permute.xlu0 0
  %103 = vperm.xlu0 %102, %v54
  %v104 = vpop.permute.xlu0 %103
  %107 = vset.pattern.permute.xlu0 0
  %108 = vperm.xlu0 %107, %v55
  %v109 = vpop.permute.xlu0 %108
  %112 = vset.pattern.permute.xlu0 0
  %113 = vperm.xlu0 %112, %v56
  %v114 = vpop.permute.xlu0 %113
  %117 = vset.pattern.permute.xlu0 0
  %118 = vperm.xlu0 %117, %v57
  %v119 = vpop.permute.xlu0 %118
  %122 = vset.pattern.permute.xlu0 0
  %123 = vperm.xlu0 %122, %v58
  %v124 = vpop.permute.xlu0 %123
  %127 = vset.pattern.permute.xlu0 0
  %128 = vperm.xlu0 %127, %v59
  %v129 = vpop.permute.xlu0 %128
  %132 = vset.pattern.permute.xlu0 0
  %133 = vperm.xlu0 %132, %v60
  %v134 = vpop.permute.xlu0 %133
  %137 = vset.pattern.permute.xlu0 0
  %138 = vperm.xlu0 %137, %v61
  %v139 = vpop.permute.xlu0 %138
  %142 = vset.pattern.permute.xlu0 0
  %143 = vperm.xlu0 %142, %v62
  %v144 = vpop.permute.xlu0 %143
  %147 = vset.pattern.permute.xlu0 0
  %148 = vperm.xlu0 %147, %v63
  %v149 = vpop.permute.xlu0 %148
  %152 = vset.pattern.permute.xlu0 0
  %153 = vperm.xlu0 %152, %v64
  %v154 = vpop.permute.xlu0 %153
  %157 = vset.pattern.permute.xlu0 0
  %158 = vperm.xlu0 %157, %v65
  %v159 = vpop.permute.xlu0 %158
  %162 = vset.pattern.permute.xlu0 0
  %163 = vperm.xlu0 %162, %v66
  %v164 = vpop.permute.xlu0 %163
  %167 = vset.pattern.permute.xlu0 0
  %168 = vperm.xlu0 %167, %v67
  %v169 = vpop.permute.xlu0 %168
  %172 = vset.pattern.permute.xlu0 0
  %173 = vperm.xlu0 %172, %v68
  %v174 = vpop.permute.xlu0 %173
  %177 = vset.pattern.permute.xlu0 0
  %178 = vperm.xlu0 %177, %v69
  %v179 = vpop.permute.xlu0 %178
  %vm181 = vcmask 64512
  %v183 = vsel %vm181, %v38, 0
  %v186 = vsel %vm181, %v39, 0
  %v189 = vsel %vm181, %v40, 0
  %v192 = vsel %vm181, %v41, 0
  %v195 = vsel %vm181, %v42, 0
  %v198 = vsel %vm181, %v43, 0
  %v201 = vsel %vm181, %v44, 0
  %v204 = vsel %vm181, %v45, 0
  %v207 = vsel %vm181, %v46, 0
  %v210 = vsel %vm181, %v47, 0
  %v213 = vsel %vm181, %v48, 0
  %v216 = vsel %vm181, %v49, 0
  %v219 = vsel %vm181, %v50, 0
  %v222 = vsel %vm181, %v51, 0
  %v225 = vsel %vm181, %v52, 0
  %v228 = vsel %vm181, %v53, 0
  %230 = vmatprep.subr.mxu0 0.0
  %231 = vmatpush1.msra.mxu0 0.0
  %232 = vmatprep.subr.mxu0 0.0
  %233 = vmatpush1.msra.mxu0 0.0
  %234 = vmatprep.subr.mxu0 0.0
  %235 = vmatpush1.msra.mxu0 0.0
  %236 = vmatprep.subr.mxu0 0.0
  %237 = vmatpush1.msra.mxu0 0.0
  %238 = vmatprep.subr.mxu0 0.0
  %239 = vmatpush1.msra.mxu0 0.0
  %240 = vmatprep.subr.mxu0 0.0
  %241 = vmatpush1.msra.mxu0 0.0
  %242 = vmatprep.subr.mxu0 0.0
  %243 = vmatpush1.msra.mxu0 0.0
  %244 = vmatprep.subr.mxu0 0.0
  %245 = vmatpush1.msra.mxu0 0.0
  %246 = vmatprep.subr.mxu0 0.0
  %247 = vmatpush1.msra.mxu0 0.0
  %248 = vmatprep.subr.mxu0 0.0
  %249 = vmatpush1.msra.mxu0 0.0
  %250 = vmatprep.subr.mxu0 0.0
  %251 = vmatpush1.msra.mxu0 0.0
  %252 = vmatprep.subr.mxu0 0.0
  %253 = vmatpush1.msra.mxu0 0.0
  %254 = vmatprep.subr.mxu0 0.0
  %255 = vmatpush1.msra.mxu0 0.0
  %256 = vmatprep.subr.mxu0 0.0
  %257 = vmatpush1.msra.mxu0 0.0
  %258 = vmatprep.subr.mxu0 0.0
  %259 = vmatpush1.msra.mxu0 0.0
  %260 = vmatprep.subr.mxu0 0.0
  %261 = vmatpush1.msra.mxu0 %v100
  %262 = vmatprep.subr.mxu0 0.0
  %263 = vmatpush2.msra.mxu0 0.0
  %264 = vmatprep.subr.mxu0 0.0
  %265 = vmatpush2.msra.mxu0 0.0
  %266 = vmatprep.subr.mxu0 0.0
  %267 = vmatpush2.msra.mxu0 0.0
  %268 = vmatprep.subr.mxu0 0.0
  %269 = vmatpush2.msra.mxu0 0.0
  %270 = vmatprep.subr.mxu0 0.0
  %271 = vmatpush2.msra.mxu0 0.0
  %272 = vmatprep.subr.mxu0 0.0
  %273 = vmatpush2.msra.mxu0 0.0
  %274 = vmatprep.subr.mxu0 0.0
  %275 = vmatpush2.msra.mxu0 0.0
  %276 = vmatprep.subr.mxu0 0.0
  %277 = vmatpush2.msra.mxu0 0.0
  %278 = vmatprep.subr.mxu0 0.0
  %279 = vmatpush2.msra.mxu0 0.0
  %280 = vmatprep.subr.mxu0 0.0
  %281 = vmatpush2.msra.mxu0 0.0
  %282 = vmatprep.subr.mxu0 0.0
  %283 = vmatpush2.msra.mxu0 0.0
  %284 = vmatprep.subr.mxu0 0.0
  %285 = vmatpush2.msra.mxu0 0.0
  %286 = vmatprep.subr.mxu0 0.0
  %287 = vmatpush2.msra.mxu0 0.0
  %288 = vmatprep.subr.mxu0 0.0
  %289 = vmatpush2.msra.mxu0 0.0
  %290 = vmatprep.subr.mxu0 0.0
  %291 = vmatpush2.msra.mxu0 0.0
  %292 = vmatprep.subr.mxu0 0.0
  %293 = vmatpush2.msra.mxu0 0.0
  %294 = vmatprep.mubr.f32.mxu0 0.0
  %295 = vmatmul.mubr.f32.gmra.mxu0 %v183
  %v296 = vpop.f32.mrf.mxu0
  %v297 = vadd.f32 %v104, %v296
  %v298 = vpop.f32.mrf.mxu0
  %299 = vmatprep.mubr.f32.mxu0 0.0
  %300 = vmatmul.mubr.f32.gmra.mxu0 %v186
  %v301 = vpop.f32.mrf.mxu0
  %v302 = vadd.f32 %v109, %v301
  %v303 = vpop.f32.mrf.mxu0
  %304 = vmatprep.mubr.f32.mxu0 0.0
  %305 = vmatmul.mubr.f32.gmra.mxu0 %v189
  %v306 = vpop.f32.mrf.mxu0
  %v307 = vadd.f32 %v114, %v306
  %v308 = vpop.f32.mrf.mxu0
  %309 = vmatprep.mubr.f32.mxu0 0.0
  %310 = vmatmul.mubr.f32.gmra.mxu0 %v192
  %v311 = vpop.f32.mrf.mxu0
  %v312 = vadd.f32 %v119, %v311
  %v313 = vpop.f32.mrf.mxu0
  %314 = vmatprep.mubr.f32.mxu0 0.0
  %315 = vmatmul.mubr.f32.gmra.mxu0 %v195
  %v316 = vpop.f32.mrf.mxu0
  %v317 = vadd.f32 %v124, %v316
  %v318 = vpop.f32.mrf.mxu0
  %319 = vmatprep.mubr.f32.mxu0 0.0
  %320 = vmatmul.mubr.f32.gmra.mxu0 %v198
  %v321 = vpop.f32.mrf.mxu0
  %v322 = vadd.f32 %v129, %v321
  %v323 = vpop.f32.mrf.mxu0
  %324 = vmatprep.mubr.f32.mxu0 0.0
  %325 = vmatmul.mubr.f32.gmra.mxu0 %v201
  %v326 = vpop.f32.mrf.mxu0
  %v327 = vadd.f32 %v134, %v326
  %v328 = vpop.f32.mrf.mxu0
  %329 = vmatprep.mubr.f32.mxu0 0.0
  %330 = vmatmul.mubr.f32.gmra.mxu0 %v204
  %v331 = vpop.f32.mrf.mxu0
  %v332 = vadd.f32 %v139, %v331
  %v333 = vpop.f32.mrf.mxu0
  %334 = vmatprep.mubr.f32.mxu0 0.0
  %335 = vmatmul.mubr.f32.gmra.mxu0 %v207
  %v336 = vpop.f32.mrf.mxu0
  %v337 = vadd.f32 %v144, %v336
  %v338 = vpop.f32.mrf.mxu0
  %339 = vmatprep.mubr.f32.mxu0 0.0
  %340 = vmatmul.mubr.f32.gmra.mxu0 %v210
  %v341 = vpop.f32.mrf.mxu0
  %v342 = vadd.f32 %v149, %v341
  %v343 = vpop.f32.mrf.mxu0
  %344 = vmatprep.mubr.f32.mxu0 0.0
  %345 = vmatmul.mubr.f32.gmra.mxu0 %v213
  %v346 = vpop.f32.mrf.mxu0
  %v347 = vadd.f32 %v154, %v346
  %v348 = vpop.f32.mrf.mxu0
  %349 = vmatprep.mubr.f32.mxu0 0.0
  %350 = vmatmul.mubr.f32.gmra.mxu0 %v216
  %v351 = vpop.f32.mrf.mxu0
  %v352 = vadd.f32 %v159, %v351
  %v353 = vpop.f32.mrf.mxu0
  %354 = vmatprep.mubr.f32.mxu0 0.0
  %355 = vmatmul.mubr.f32.gmra.mxu0 %v219
  %v356 = vpop.f32.mrf.mxu0
  %v357 = vadd.f32 %v164, %v356
  %v358 = vpop.f32.mrf.mxu0
  %359 = vmatprep.mubr.f32.mxu0 0.0
  %360 = vmatmul.mubr.f32.gmra.mxu0 %v222
  %v361 = vpop.f32.mrf.mxu0
  %v362 = vadd.f32 %v169, %v361
  %v363 = vpop.f32.mrf.mxu0
  %364 = vmatprep.mubr.f32.mxu0 0.0
  %365 = vmatmul.mubr.f32.gmra.mxu0 %v225
  %v366 = vpop.f32.mrf.mxu0
  %v367 = vadd.f32 %v174, %v366
  %v368 = vpop.f32.mrf.mxu0
  %369 = vmatprep.mubr.f32.mxu0 0.0
  %370 = vmatmul.mubr.f32.gmra.mxu0 %v228
  %v371 = vpop.f32.mrf.mxu0
  %v372 = vadd.f32 %v179, %v371
  %v373 = vpop.f32.mrf.mxu0
  %374 = vdwg.mxu0
  %v375 = vmax.f32 %v297, 0.0
  %v376 = vmax.f32 %v302, 0.0
  %v377 = vmax.f32 %v307, 0.0
  %v378 = vmax.f32 %v312, 0.0
  %v379 = vmax.f32 %v317, 0.0
  %v380 = vmax.f32 %v322, 0.0
  %v381 = vmax.f32 %v327, 0.0
  %v382 = vmax.f32 %v332, 0.0
  %v383 = vmax.f32 %v337, 0.0
  %v384 = vmax.f32 %v342, 0.0
  %v385 = vmax.f32 %v347, 0.0
  %v386 = vmax.f32 %v352, 0.0
  %v387 = vmax.f32 %v357, 0.0
  %v388 = vmax.f32 %v362, 0.0
  %v389 = vmax.f32 %v367, 0.0
  %v390 = vmax.f32 %v372, 0.0
  %392 = vset.pattern.permute.xlu0 0
  %393 = vperm.xlu0 %392, %v78
  %v394 = vpop.permute.xlu0 %393
  %397 = vset.pattern.permute.xlu0 0
  %398 = vperm.xlu0 %397, %v79
  %v399 = vpop.permute.xlu0 %398
  %402 = vset.pattern.permute.xlu0 0
  %403 = vperm.xlu0 %402, %v80
  %v404 = vpop.permute.xlu0 %403
  %407 = vset.pattern.permute.xlu0 0
  %408 = vperm.xlu0 %407, %v81
  %v409 = vpop.permute.xlu0 %408
  %412 = vset.pattern.permute.xlu0 0
  %413 = vperm.xlu0 %412, %v82
  %v414 = vpop.permute.xlu0 %413
  %417 = vset.pattern.permute.xlu0 0
  %418 = vperm.xlu0 %417, %v83
  %v419 = vpop.permute.xlu0 %418
  %422 = vset.pattern.permute.xlu0 0
  %423 = vperm.xlu0 %422, %v84
  %v424 = vpop.permute.xlu0 %423
  %427 = vset.pattern.permute.xlu0 0
  %428 = vperm.xlu0 %427, %v85
  %v429 = vpop.permute.xlu0 %428
  %431 = vmatprep.subr.mxu0 0.0
  %432 = vmatpush1.msra.mxu0 %v390
  %433 = vmatprep.subr.mxu0 0.0
  %434 = vmatpush1.msra.mxu0 %v389
  %435 = vmatprep.subr.mxu0 0.0
  %436 = vmatpush1.msra.mxu0 %v388
  %437 = vmatprep.subr.mxu0 0.0
  %438 = vmatpush1.msra.mxu0 %v387
  %439 = vmatprep.subr.mxu0 0.0
  %440 = vmatpush1.msra.mxu0 %v386
  %441 = vmatprep.subr.mxu0 0.0
  %442 = vmatpush1.msra.mxu0 %v385
  %443 = vmatprep.subr.mxu0 0.0
  %444 = vmatpush1.msra.mxu0 %v384
  %445 = vmatprep.subr.mxu0 0.0
  %446 = vmatpush1.msra.mxu0 %v383
  %447 = vmatprep.subr.mxu0 0.0
  %448 = vmatpush1.msra.mxu0 %v382
  %449 = vmatprep.subr.mxu0 0.0
  %450 = vmatpush1.msra.mxu0 %v381
  %451 = vmatprep.subr.mxu0 0.0
  %452 = vmatpush1.msra.mxu0 %v380
  %453 = vmatprep.subr.mxu0 0.0
  %454 = vmatpush1.msra.mxu0 %v379
  %455 = vmatprep.subr.mxu0 0.0
  %456 = vmatpush1.msra.mxu0 %v378
  %457 = vmatprep.subr.mxu0 0.0
  %458 = vmatpush1.msra.mxu0 %v377
  %459 = vmatprep.subr.mxu0 0.0
  %460 = vmatpush1.msra.mxu0 %v376
  %461 = vmatprep.subr.mxu0 0.0
  %462 = vmatpush1.msra.mxu0 %v375
  %463 = vmatprep.subr.mxu0 0.0
  %464 = vmatpush2.msra.mxu0 0.0
  %465 = vmatprep.subr.mxu0 0.0
  %466 = vmatpush2.msra.mxu0 0.0
  %467 = vmatprep.subr.mxu0 0.0
  %468 = vmatpush2.msra.mxu0 0.0
  %469 = vmatprep.subr.mxu0 0.0
  %470 = vmatpush2.msra.mxu0 0.0
  %471 = vmatprep.subr.mxu0 0.0
  %472 = vmatpush2.msra.mxu0 0.0
  %473 = vmatprep.subr.mxu0 0.0
  %474 = vmatpush2.msra.mxu0 0.0
  %475 = vmatprep.subr.mxu0 0.0
  %476 = vmatpush2.msra.mxu0 0.0
  %477 = vmatprep.subr.mxu0 0.0
  %478 = vmatpush2.msra.mxu0 0.0
  %479 = vmatprep.subr.mxu0 0.0
  %480 = vmatpush2.msra.mxu0 0.0
  %481 = vmatprep.subr.mxu0 0.0
  %482 = vmatpush2.msra.mxu0 0.0
  %483 = vmatprep.subr.mxu0 0.0
  %484 = vmatpush2.msra.mxu0 0.0
  %485 = vmatprep.subr.mxu0 0.0
  %486 = vmatpush2.msra.mxu0 0.0
  %487 = vmatprep.subr.mxu0 0.0
  %488 = vmatpush2.msra.mxu0 0.0
  %489 = vmatprep.subr.mxu0 0.0
  %490 = vmatpush2.msra.mxu0 0.0
  %491 = vmatprep.subr.mxu0 0.0
  %492 = vmatpush2.msra.mxu0 0.0
  %493 = vmatprep.subr.mxu0 0.0
  %494 = vmatpush2.msra.mxu0 0.0
  %495 = vmatprep.mubr.f32.mxu0 0.0
  %496 = vmatmul.mubr.f32.gmra.mxu0 %v70
  %v497 = vpop.f32.mrf.mxu0
  %v498 = vadd.f32 %v394, %v497
  %v499 = vpop.f32.mrf.mxu0
  %500 = vmatprep.mubr.f32.mxu0 0.0
  %501 = vmatmul.mubr.f32.gmra.mxu0 %v71
  %v502 = vpop.f32.mrf.mxu0
  %v503 = vadd.f32 %v399, %v502
  %v504 = vpop.f32.mrf.mxu0
  %505 = vmatprep.mubr.f32.mxu0 0.0
  %506 = vmatmul.mubr.f32.gmra.mxu0 %v72
  %v507 = vpop.f32.mrf.mxu0
  %v508 = vadd.f32 %v404, %v507
  %v509 = vpop.f32.mrf.mxu0
  %510 = vmatprep.mubr.f32.mxu0 0.0
  %511 = vmatmul.mubr.f32.gmra.mxu0 %v73
  %v512 = vpop.f32.mrf.mxu0
  %v513 = vadd.f32 %v409, %v512
  %v514 = vpop.f32.mrf.mxu0
  %515 = vmatprep.mubr.f32.mxu0 0.0
  %516 = vmatmul.mubr.f32.gmra.mxu0 %v74
  %v517 = vpop.f32.mrf.mxu0
  %v518 = vadd.f32 %v414, %v517
  %v519 = vpop.f32.mrf.mxu0
  %520 = vmatprep.mubr.f32.mxu0 0.0
  %521 = vmatmul.mubr.f32.gmra.mxu0 %v75
  %v522 = vpop.f32.mrf.mxu0
  %v523 = vadd.f32 %v419, %v522
  %v524 = vpop.f32.mrf.mxu0
  %525 = vmatprep.mubr.f32.mxu0 0.0
  %526 = vmatmul.mubr.f32.gmra.mxu0 %v76
  %v527 = vpop.f32.mrf.mxu0
  %v528 = vadd.f32 %v424, %v527
  %v529 = vpop.f32.mrf.mxu0
  %530 = vmatprep.mubr.f32.mxu0 0.0
  %531 = vmatmul.mubr.f32.gmra.mxu0 %v77
  %v532 = vpop.f32.mrf.mxu0
  %v533 = vadd.f32 %v429, %v532
  %v534 = vpop.f32.mrf.mxu0
  %535 = vdwg.mxu0
  %v536 = vmax.f32 %v498, 0.0
  %v537 = vmax.f32 %v503, 0.0
  %v538 = vmax.f32 %v508, 0.0
  %v539 = vmax.f32 %v513, 0.0
  %v540 = vmax.f32 %v518, 0.0
  %v541 = vmax.f32 %v523, 0.0
  %v542 = vmax.f32 %v528, 0.0
  %v543 = vmax.f32 %v533, 0.0
  %545 = vset.pattern.permute.xlu0 0
  %546 = vperm.xlu0 %545, %v90
  %v547 = vpop.permute.xlu0 %546
  %550 = vset.pattern.permute.xlu0 0
  %551 = vperm.xlu0 %550, %v91
  %v552 = vpop.permute.xlu0 %551
  %555 = vset.pattern.permute.xlu0 0
  %556 = vperm.xlu0 %555, %v92
  %v557 = vpop.permute.xlu0 %556
  %560 = vset.pattern.permute.xlu0 0
  %561 = vperm.xlu0 %560, %v93
  %v562 = vpop.permute.xlu0 %561
  %vm564 = vcmask 523264
  %v566 = vsel %vm564, %v86, 0
  %v569 = vsel %vm564, %v87, 0
  %v572 = vsel %vm564, %v88, 0
  %v575 = vsel %vm564, %v89, 0
  %577 = vmatprep.subr.mxu0 0.0
  %578 = vmatpush1.msra.mxu0 0.0
  %579 = vmatprep.subr.mxu0 0.0
  %580 = vmatpush1.msra.mxu0 0.0
  %581 = vmatprep.subr.mxu0 0.0
  %582 = vmatpush1.msra.mxu0 0.0
  %583 = vmatprep.subr.mxu0 0.0
  %584 = vmatpush1.msra.mxu0 0.0
  %585 = vmatprep.subr.mxu0 0.0
  %586 = vmatpush1.msra.mxu0 0.0
  %587 = vmatprep.subr.mxu0 0.0
  %588 = vmatpush1.msra.mxu0 0.0
  %589 = vmatprep.subr.mxu0 0.0
  %590 = vmatpush1.msra.mxu0 0.0
  %591 = vmatprep.subr.mxu0 0.0
  %592 = vmatpush1.msra.mxu0 0.0
  %593 = vmatprep.subr.mxu0 0.0
  %594 = vmatpush1.msra.mxu0 %v543
  %595 = vmatprep.subr.mxu0 0.0
  %596 = vmatpush1.msra.mxu0 %v542
  %597 = vmatprep.subr.mxu0 0.0
  %598 = vmatpush1.msra.mxu0 %v541
  %599 = vmatprep.subr.mxu0 0.0
  %600 = vmatpush1.msra.mxu0 %v540
  %601 = vmatprep.subr.mxu0 0.0
  %602 = vmatpush1.msra.mxu0 %v539
  %603 = vmatprep.subr.mxu0 0.0
  %604 = vmatpush1.msra.mxu0 %v538
  %605 = vmatprep.subr.mxu0 0.0
  %606 = vmatpush1.msra.mxu0 %v537
  %607 = vmatprep.subr.mxu0 0.0
  %608 = vmatpush1.msra.mxu0 %v536
  %609 = vmatprep.subr.mxu0 0.0
  %610 = vmatpush2.msra.mxu0 0.0
  %611 = vmatprep.subr.mxu0 0.0
  %612 = vmatpush2.msra.mxu0 0.0
  %613 = vmatprep.subr.mxu0 0.0
  %614 = vmatpush2.msra.mxu0 0.0
  %615 = vmatprep.subr.mxu0 0.0
  %616 = vmatpush2.msra.mxu0 0.0
  %617 = vmatprep.subr.mxu0 0.0
  %618 = vmatpush2.msra.mxu0 0.0
  %619 = vmatprep.subr.mxu0 0.0
  %620 = vmatpush2.msra.mxu0 0.0
  %621 = vmatprep.subr.mxu0 0.0
  %622 = vmatpush2.msra.mxu0 0.0
  %623 = vmatprep.subr.mxu0 0.0
  %624 = vmatpush2.msra.mxu0 0.0
  %625 = vmatprep.subr.mxu0 0.0
  %626 = vmatpush2.msra.mxu0 0.0
  %627 = vmatprep.subr.mxu0 0.0
  %628 = vmatpush2.msra.mxu0 0.0
  %629 = vmatprep.subr.mxu0 0.0
  %630 = vmatpush2.msra.mxu0 0.0
  %631 = vmatprep.subr.mxu0 0.0
  %632 = vmatpush2.msra.mxu0 0.0
  %633 = vmatprep.subr.mxu0 0.0
  %634 = vmatpush2.msra.mxu0 0.0
  %635 = vmatprep.subr.mxu0 0.0
  %636 = vmatpush2.msra.mxu0 0.0
  %637 = vmatprep.subr.mxu0 0.0
  %638 = vmatpush2.msra.mxu0 0.0
  %639 = vmatprep.subr.mxu0 0.0
  %640 = vmatpush2.msra.mxu0 0.0
  %641 = vmatprep.mubr.f32.mxu0 0.0
  %642 = vmatmul.mubr.f32.gmra.mxu0 %v566
  %v643 = vpop.f32.mrf.mxu0
  %v644 = vadd.f32 %v547, %v643
  %v645 = vpop.f32.mrf.mxu0
  %646 = vmatprep.mubr.f32.mxu0 0.0
  %647 = vmatmul.mubr.f32.gmra.mxu0 %v569
  %v648 = vpop.f32.mrf.mxu0
  %v649 = vadd.f32 %v552, %v648
  %v650 = vpop.f32.mrf.mxu0
  %651 = vmatprep.mubr.f32.mxu0 0.0
  %652 = vmatmul.mubr.f32.gmra.mxu0 %v572
  %v653 = vpop.f32.mrf.mxu0
  %v654 = vadd.f32 %v557, %v653
  %v655 = vpop.f32.mrf.mxu0
  %656 = vmatprep.mubr.f32.mxu0 0.0
  %657 = vmatmul.mubr.f32.gmra.mxu0 %v575
  %v658 = vpop.f32.mrf.mxu0
  %v659 = vadd.f32 %v562, %v658
  %v660 = vpop.f32.mrf.mxu0
  %661 = vdwg.mxu0
  %v662 = vmax.f32 %v644, 0.0
  %v663 = vmax.f32 %v649, 0.0
  %v664 = vmax.f32 %v654, 0.0
  %v665 = vmax.f32 %v659, 0.0
  %667 = vset.pattern.permute.xlu0 0
  %668 = vperm.xlu0 %667, %v96
  %v669 = vpop.permute.xlu0 %668
  %672 = vset.pattern.permute.xlu0 0
  %673 = vperm.xlu0 %672, %v97
  %v674 = vpop.permute.xlu0 %673
  %vm676 = vcmask 261120
  %v678 = vsel %vm676, %v94, 0
  %v681 = vsel %vm676, %v95, 0
  %683 = vmatprep.subr.mxu0 0.0
  %684 = vmatpush1.msra.mxu0 0.0
  %685 = vmatprep.subr.mxu0 0.0
  %686 = vmatpush1.msra.mxu0 0.0
  %687 = vmatprep.subr.mxu0 0.0
  %688 = vmatpush1.msra.mxu0 0.0
  %689 = vmatprep.subr.mxu0 0.0
  %690 = vmatpush1.msra.mxu0 0.0
  %691 = vmatprep.subr.mxu0 0.0
  %692 = vmatpush1.msra.mxu0 0.0
  %693 = vmatprep.subr.mxu0 0.0
  %694 = vmatpush1.msra.mxu0 0.0
  %695 = vmatprep.subr.mxu0 0.0
  %696 = vmatpush1.msra.mxu0 0.0
  %697 = vmatprep.subr.mxu0 0.0
  %698 = vmatpush1.msra.mxu0 0.0
  %699 = vmatprep.subr.mxu0 0.0
  %700 = vmatpush1.msra.mxu0 0.0
  %701 = vmatprep.subr.mxu0 0.0
  %702 = vmatpush1.msra.mxu0 0.0
  %703 = vmatprep.subr.mxu0 0.0
  %704 = vmatpush1.msra.mxu0 0.0
  %705 = vmatprep.subr.mxu0 0.0
  %706 = vmatpush1.msra.mxu0 0.0
  %707 = vmatprep.subr.mxu0 0.0
  %708 = vmatpush1.msra.mxu0 %v665
  %709 = vmatprep.subr.mxu0 0.0
  %710 = vmatpush1.msra.mxu0 %v664
  %711 = vmatprep.subr.mxu0 0.0
  %712 = vmatpush1.msra.mxu0 %v663
  %713 = vmatprep.subr.mxu0 0.0
  %714 = vmatpush1.msra.mxu0 %v662
  %715 = vmatprep.subr.mxu0 0.0
  %716 = vmatpush2.msra.mxu0 0.0
  %717 = vmatprep.subr.mxu0 0.0
  %718 = vmatpush2.msra.mxu0 0.0
  %719 = vmatprep.subr.mxu0 0.0
  %720 = vmatpush2.msra.mxu0 0.0
  %721 = vmatprep.subr.mxu0 0.0
  %722 = vmatpush2.msra.mxu0 0.0
  %723 = vmatprep.subr.mxu0 0.0
  %724 = vmatpush2.msra.mxu0 0.0
  %725 = vmatprep.subr.mxu0 0.0
  %726 = vmatpush2.msra.mxu0 0.0
  %727 = vmatprep.subr.mxu0 0.0
  %728 = vmatpush2.msra.mxu0 0.0
  %729 = vmatprep.subr.mxu0 0.0
  %730 = vmatpush2.msra.mxu0 0.0
  %731 = vmatprep.subr.mxu0 0.0
  %732 = vmatpush2.msra.mxu0 0.0
  %733 = vmatprep.subr.mxu0 0.0
  %734 = vmatpush2.msra.mxu0 0.0
  %735 = vmatprep.subr.mxu0 0.0
  %736 = vmatpush2.msra.mxu0 0.0
  %737 = vmatprep.subr.mxu0 0.0
  %738 = vmatpush2.msra.mxu0 0.0
  %739 = vmatprep.subr.mxu0 0.0
  %740 = vmatpush2.msra.mxu0 0.0
  %741 = vmatprep.subr.mxu0 0.0
  %742 = vmatpush2.msra.mxu0 0.0
  %743 = vmatprep.subr.mxu0 0.0
  %744 = vmatpush2.msra.mxu0 0.0
  %745 = vmatprep.subr.mxu0 0.0
  %746 = vmatpush2.msra.mxu0 0.0
  %747 = vmatprep.mubr.f32.mxu0 0.0
  %748 = vmatmul.mubr.f32.gmra.mxu0 %v678
  %v749 = vpop.f32.mrf.mxu0
  %v750 = vadd.f32 %v669, %v749
  %v751 = vpop.f32.mrf.mxu0
  %752 = vmatprep.mubr.f32.mxu0 0.0
  %753 = vmatmul.mubr.f32.gmra.mxu0 %v681
  %v754 = vpop.f32.mrf.mxu0
  %v755 = vadd.f32 %v674, %v754
  %v756 = vpop.f32.mrf.mxu0
  %757 = vdwg.mxu0
  %v758 = vmax.f32 %v750, 0.0
  %v759 = vmax.f32 %v755, 0.0
  %761 = vset.pattern.permute.xlu0 0
  %762 = vperm.xlu0 %761, %v99
  %v763 = vpop.permute.xlu0 %762
  %vm765 = vcmask 130048
  %v767 = vsel %vm765, %v98, 0
  %769 = vmatprep.subr.mxu0 0.0
  %770 = vmatpush1.msra.mxu0 0.0
  %771 = vmatprep.subr.mxu0 0.0
  %772 = vmatpush1.msra.mxu0 0.0
  %773 = vmatprep.subr.mxu0 0.0
  %774 = vmatpush1.msra.mxu0 0.0
  %775 = vmatprep.subr.mxu0 0.0
  %776 = vmatpush1.msra.mxu0 0.0
  %777 = vmatprep.subr.mxu0 0.0
  %778 = vmatpush1.msra.mxu0 0.0
  %779 = vmatprep.subr.mxu0 0.0
  %780 = vmatpush1.msra.mxu0 0.0
  %781 = vmatprep.subr.mxu0 0.0
  %782 = vmatpush1.msra.mxu0 0.0
  %783 = vmatprep.subr.mxu0 0.0
  %784 = vmatpush1.msra.mxu0 0.0
  %785 = vmatprep.subr.mxu0 0.0
  %786 = vmatpush1.msra.mxu0 0.0
  %787 = vmatprep.subr.mxu0 0.0
  %788 = vmatpush1.msra.mxu0 0.0
  %789 = vmatprep.subr.mxu0 0.0
  %790 = vmatpush1.msra.mxu0 0.0
  %791 = vmatprep.subr.mxu0 0.0
  %792 = vmatpush1.msra.mxu0 0.0
  %793 = vmatprep.subr.mxu0 0.0
  %794 = vmatpush1.msra.mxu0 0.0
  %795 = vmatprep.subr.mxu0 0.0
  %796 = vmatpush1.msra.mxu0 0.0
  %797 = vmatprep.subr.mxu0 0.0
  %798 = vmatpush1.msra.mxu0 %v759
  %799 = vmatprep.subr.mxu0 0.0
  %800 = vmatpush1.msra.mxu0 %v758
  %801 = vmatprep.subr.mxu0 0.0
  %802 = vmatpush2.msra.mxu0 0.0
  %803 = vmatprep.subr.mxu0 0.0
  %804 = vmatpush2.msra.mxu0 0.0
  %805 = vmatprep.subr.mxu0 0.0
  %806 = vmatpush2.msra.mxu0 0.0
  %807 = vmatprep.subr.mxu0 0.0
  %808 = vmatpush2.msra.mxu0 0.0
  %809 = vmatprep.subr.mxu0 0.0
  %810 = vmatpush2.msra.mxu0 0.0
  %811 = vmatprep.subr.mxu0 0.0
  %812 = vmatpush2.msra.mxu0 0.0
  %813 = vmatprep.subr.mxu0 0.0
  %814 = vmatpush2.msra.mxu0 0.0
  %815 = vmatprep.subr.mxu0 0.0
  %816 = vmatpush2.msra.mxu0 0.0
  %817 = vmatprep.subr.mxu0 0.0
  %818 = vmatpush2.msra.mxu0 0.0
  %819 = vmatprep.subr.mxu0 0.0
  %820 = vmatpush2.msra.mxu0 0.0
  %821 = vmatprep.subr.mxu0 0.0
  %822 = vmatpush2.msra.mxu0 0.0
  %823 = vmatprep.subr.mxu0 0.0
  %824 = vmatpush2.msra.mxu0 0.0
  %825 = vmatprep.subr.mxu0 0.0
  %826 = vmatpush2.msra.mxu0 0.0
  %827 = vmatprep.subr.mxu0 0.0
  %828 = vmatpush2.msra.mxu0 0.0
  %829 = vmatprep.subr.mxu0 0.0
  %830 = vmatpush2.msra.mxu0 0.0
  %831 = vmatprep.subr.mxu0 0.0
  %832 = vmatpush2.msra.mxu0 0.0
  %833 = vmatprep.mubr.f32.mxu0 0.0
  %834 = vmatmul.mubr.f32.gmra.mxu0 %v767
  %v835 = vpop.f32.mrf.mxu0
  %v836 = vadd.f32 %v763, %v835
  %v837 = vpop.f32.mrf.mxu0
  %838 = vdwg.mxu0
  %vm839 = vcmask 31744
  %840 = vst.msk [vmem:[%s11] sm:$0xff] %vm839, %v836
  %s841 = scalar_lea.vmem %s0, 8
  %v842 = vld [vmem:[%s841] sm:$0xff]
  %843 = vmatprep.subr.mxu0 0.0
  %844 = vmatpush1.msra.mxu0 0.0
  %845 = vmatprep.subr.mxu0 0.0
  %846 = vmatpush1.msra.mxu0 0.0
  %847 = vmatprep.subr.mxu0 0.0
  %848 = vmatpush1.msra.mxu0 0.0
  %849 = vmatprep.subr.mxu0 0.0
  %850 = vmatpush1.msra.mxu0 0.0
  %851 = vmatprep.subr.mxu0 0.0
  %852 = vmatpush1.msra.mxu0 0.0
  %853 = vmatprep.subr.mxu0 0.0
  %854 = vmatpush1.msra.mxu0 0.0
  %855 = vmatprep.subr.mxu0 0.0
  %856 = vmatpush1.msra.mxu0 0.0
  %857 = vmatprep.subr.mxu0 0.0
  %858 = vmatpush1.msra.mxu0 0.0
  %859 = vmatprep.subr.mxu0 0.0
  %860 = vmatpush1.msra.mxu0 0.0
  %861 = vmatprep.subr.mxu0 0.0
  %862 = vmatpush1.msra.mxu0 0.0
  %863 = vmatprep.subr.mxu0 0.0
  %864 = vmatpush1.msra.mxu0 0.0
  %865 = vmatprep.subr.mxu0 0.0
  %866 = vmatpush1.msra.mxu0 0.0
  %867 = vmatprep.subr.mxu0 0.0
  %868 = vmatpush1.msra.mxu0 0.0
  %869 = vmatprep.subr.mxu0 0.0
  %870 = vmatpush1.msra.mxu0 0.0
  %871 = vmatprep.subr.mxu0 0.0
  %872 = vmatpush1.msra.mxu0 0.0
  %873 = vmatprep.subr.mxu0 0.0
  %874 = vmatpush1.msra.mxu0 %v842
  %875 = vmatprep.subr.mxu0 0.0
  %876 = vmatpush2.msra.mxu0 0.0
  %877 = vmatprep.subr.mxu0 0.0
  %878 = vmatpush2.msra.mxu0 0.0
  %879 = vmatprep.subr.mxu0 0.0
  %880 = vmatpush2.msra.mxu0 0.0
  %881 = vmatprep.subr.mxu0 0.0
  %882 = vmatpush2.msra.mxu0 0.0
  %883 = vmatprep.subr.mxu0 0.0
  %884 = vmatpush2.msra.mxu0 0.0
  %885 = vmatprep.subr.mxu0 0.0
  %886 = vmatpush2.msra.mxu0 0.0
  %887 = vmatprep.subr.mxu0 0.0
  %888 = vmatpush2.msra.mxu0 0.0
  %889 = vmatprep.subr.mxu0 0.0
  %890 = vmatpush2.msra.mxu0 0.0
  %891 = vmatprep.subr.mxu0 0.0
  %892 = vmatpush2.msra.mxu0 0.0
  %893 = vmatprep.subr.mxu0 0.0
  %894 = vmatpush2.msra.mxu0 0.0
  %895 = vmatprep.subr.mxu0 0.0
  %896 = vmatpush2.msra.mxu0 0.0
  %897 = vmatprep.subr.mxu0 0.0
  %898 = vmatpush2.msra.mxu0 0.0
  %899 = vmatprep.subr.mxu0 0.0
  %900 = vmatpush2.msra.mxu0 0.0
  %901 = vmatprep.subr.mxu0 0.0
  %902 = vmatpush2.msra.mxu0 0.0
  %903 = vmatprep.subr.mxu0 0.0
  %904 = vmatpush2.msra.mxu0 0.0
  %905 = vmatprep.subr.mxu0 0.0
  %906 = vmatpush2.msra.mxu0 0.0
  %907 = vmatprep.mubr.f32.mxu0 0.0
  %908 = vmatmul.mubr.f32.gmra.mxu0 %v183
  %v909 = vpop.f32.mrf.mxu0
  %v910 = vadd.f32 %v104, %v909
  %v911 = vpop.f32.mrf.mxu0
  %912 = vmatprep.mubr.f32.mxu0 0.0
  %913 = vmatmul.mubr.f32.gmra.mxu0 %v186
  %v914 = vpop.f32.mrf.mxu0
  %v915 = vadd.f32 %v109, %v914
  %v916 = vpop.f32.mrf.mxu0
  %917 = vmatprep.mubr.f32.mxu0 0.0
  %918 = vmatmul.mubr.f32.gmra.mxu0 %v189
  %v919 = vpop.f32.mrf.mxu0
  %v920 = vadd.f32 %v114, %v919
  %v921 = vpop.f32.mrf.mxu0
  %922 = vmatprep.mubr.f32.mxu0 0.0
  %923 = vmatmul.mubr.f32.gmra.mxu0 %v192
  %v924 = vpop.f32.mrf.mxu0
  %v925 = vadd.f32 %v119, %v924
  %v926 = vpop.f32.mrf.mxu0
  %927 = vmatprep.mubr.f32.mxu0 0.0
  %928 = vmatmul.mubr.f32.gmra.mxu0 %v195
  %v929 = vpop.f32.mrf.mxu0
  %v930 = vadd.f32 %v124, %v929
  %v931 = vpop.f32.mrf.mxu0
  %932 = vmatprep.mubr.f32.mxu0 0.0
  %933 = vmatmul.mubr.f32.gmra.mxu0 %v198
  %v934 = vpop.f32.mrf.mxu0
  %v935 = vadd.f32 %v129, %v934
  %v936 = vpop.f32.mrf.mxu0
  %937 = vmatprep.mubr.f32.mxu0 0.0
  %938 = vmatmul.mubr.f32.gmra.mxu0 %v201
  %v939 = vpop.f32.mrf.mxu0
  %v940 = vadd.f32 %v134, %v939
  %v941 = vpop.f32.mrf.mxu0
  %942 = vmatprep.mubr.f32.mxu0 0.0
  %943 = vmatmul.mubr.f32.gmra.mxu0 %v204
  %v944 = vpop.f32.mrf.mxu0
  %v945 = vadd.f32 %v139, %v944
  %v946 = vpop.f32.mrf.mxu0
  %947 = vmatprep.mubr.f32.mxu0 0.0
  %948 = vmatmul.mubr.f32.gmra.mxu0 %v207
  %v949 = vpop.f32.mrf.mxu0
  %v950 = vadd.f32 %v144, %v949
  %v951 = vpop.f32.mrf.mxu0
  %952 = vmatprep.mubr.f32.mxu0 0.0
  %953 = vmatmul.mubr.f32.gmra.mxu0 %v210
  %v954 = vpop.f32.mrf.mxu0
  %v955 = vadd.f32 %v149, %v954
  %v956 = vpop.f32.mrf.mxu0
  %957 = vmatprep.mubr.f32.mxu0 0.0
  %958 = vmatmul.mubr.f32.gmra.mxu0 %v213
  %v959 = vpop.f32.mrf.mxu0
  %v960 = vadd.f32 %v154, %v959
  %v961 = vpop.f32.mrf.mxu0
  %962 = vmatprep.mubr.f32.mxu0 0.0
  %963 = vmatmul.mubr.f32.gmra.mxu0 %v216
  %v964 = vpop.f32.mrf.mxu0
  %v965 = vadd.f32 %v159, %v964
  %v966 = vpop.f32.mrf.mxu0
  %967 = vmatprep.mubr.f32.mxu0 0.0
  %968 = vmatmul.mubr.f32.gmra.mxu0 %v219
  %v969 = vpop.f32.mrf.mxu0
  %v970 = vadd.f32 %v164, %v969
  %v971 = vpop.f32.mrf.mxu0
  %972 = vmatprep.mubr.f32.mxu0 0.0
  %973 = vmatmul.mubr.f32.gmra.mxu0 %v222
  %v974 = vpop.f32.mrf.mxu0
  %v975 = vadd.f32 %v169, %v974
  %v976 = vpop.f32.mrf.mxu0
  %977 = vmatprep.mubr.f32.mxu0 0.0
  %978 = vmatmul.mubr.f32.gmra.mxu0 %v225
  %v979 = vpop.f32.mrf.mxu0
  %v980 = vadd.f32 %v174, %v979
  %v981 = vpop.f32.mrf.mxu0
  %982 = vmatprep.mubr.f32.mxu0 0.0
  %983 = vmatmul.mubr.f32.gmra.mxu0 %v228
  %v984 = vpop.f32.mrf.mxu0
  %v985 = vadd.f32 %v179, %v984
  %v986 = vpop.f32.mrf.mxu0
  %987 = vdwg.mxu0
  %v988 = vmax.f32 %v910, 0.0
  %v989 = vmax.f32 %v915, 0.0
  %v990 = vmax.f32 %v920, 0.0
  %v991 = vmax.f32 %v925, 0.0
  %v992 = vmax.f32 %v930, 0.0
  %v993 = vmax.f32 %v935, 0.0
  %v994 = vmax.f32 %v940, 0.0
  %v995 = vmax.f32 %v945, 0.0
  %v996 = vmax.f32 %v950, 0.0
  %v997 = vmax.f32 %v955, 0.0
  %v998 = vmax.f32 %v960, 0.0
  %v999 = vmax.f32 %v965, 0.0
  %v1000 = vmax.f32 %v970, 0.0
  %v1001 = vmax.f32 %v975, 0.0
  %v1002 = vmax.f32 %v980, 0.0
  %v1003 = vmax.f32 %v985, 0.0
  %1004 = vmatprep.subr.mxu0 0.0
  %1005 = vmatpush1.msra.mxu0 %v1003
  %1006 = vmatprep.subr.mxu0 0.0
  %1007 = vmatpush1.msra.mxu0 %v1002
  %1008 = vmatprep.subr.mxu0 0.0
  %1009 = vmatpush1.msra.mxu0 %v1001
  %1010 = vmatprep.subr.mxu0 0.0
  %1011 = vmatpush1.msra.mxu0 %v1000
  %1012 = vmatprep.subr.mxu0 0.0
  %1013 = vmatpush1.msra.mxu0 %v999
  %1014 = vmatprep.subr.mxu0 0.0
  %1015 = vmatpush1.msra.mxu0 %v998
  %1016 = vmatprep.subr.mxu0 0.0
  %1017 = vmatpush1.msra.mxu0 %v997
  %1018 = vmatprep.subr.mxu0 0.0
  %1019 = vmatpush1.msra.mxu0 %v996
  %1020 = vmatprep.subr.mxu0 0.0
  %1021 = vmatpush1.msra.mxu0 %v995
  %1022 = vmatprep.subr.mxu0 0.0
  %1023 = vmatpush1.msra.mxu0 %v994
  %1024 = vmatprep.subr.mxu0 0.0
  %1025 = vmatpush1.msra.mxu0 %v993
  %1026 = vmatprep.subr.mxu0 0.0
  %1027 = vmatpush1.msra.mxu0 %v992
  %1028 = vmatprep.subr.mxu0 0.0
  %1029 = vmatpush1.msra.mxu0 %v991
  %1030 = vmatprep.subr.mxu0 0.0
  %1031 = vmatpush1.msra.mxu0 %v990
  %1032 = vmatprep.subr.mxu0 0.0
  %1033 = vmatpush1.msra.mxu0 %v989
  %1034 = vmatprep.subr.mxu0 0.0
  %1035 = vmatpush1.msra.mxu0 %v988
  %1036 = vmatprep.subr.mxu0 0.0
  %1037 = vmatpush2.msra.mxu0 0.0
  %1038 = vmatprep.subr.mxu0 0.0
  %1039 = vmatpush2.msra.mxu0 0.0
  %1040 = vmatprep.subr.mxu0 0.0
  %1041 = vmatpush2.msra.mxu0 0.0
  %1042 = vmatprep.subr.mxu0 0.0
  %1043 = vmatpush2.msra.mxu0 0.0
  %1044 = vmatprep.subr.mxu0 0.0
  %1045 = vmatpush2.msra.mxu0 0.0
  %1046 = vmatprep.subr.mxu0 0.0
  %1047 = vmatpush2.msra.mxu0 0.0
  %1048 = vmatprep.subr.mxu0 0.0
  %1049 = vmatpush2.msra.mxu0 0.0
  %1050 = vmatprep.subr.mxu0 0.0
  %1051 = vmatpush2.msra.mxu0 0.0
  %1052 = vmatprep.subr.mxu0 0.0
  %1053 = vmatpush2.msra.mxu0 0.0
  %1054 = vmatprep.subr.mxu0 0.0
  %1055 = vmatpush2.msra.mxu0 0.0
  %1056 = vmatprep.subr.mxu0 0.0
  %1057 = vmatpush2.msra.mxu0 0.0
  %1058 = vmatprep.subr.mxu0 0.0
  %1059 = vmatpush2.msra.mxu0 0.0
  %1060 = vmatprep.subr.mxu0 0.0
  %1061 = vmatpush2.msra.mxu0 0.0
  %1062 = vmatprep.subr.mxu0 0.0
  %1063 = vmatpush2.msra.mxu0 0.0
  %1064 = vmatprep.subr.mxu0 0.0
  %1065 = vmatpush2.msra.mxu0 0.0
  %1066 = vmatprep.subr.mxu0 0.0
  %1067 = vmatpush2.msra.mxu0 0.0
  %1068 = vmatprep.mubr.f32.mxu0 0.0
  %1069 = vmatmul.mubr.f32.gmra.mxu0 %v70
  %v1070 = vpop.f32.mrf.mxu0
  %v1071 = vadd.f32 %v394, %v1070
  %v1072 = vpop.f32.mrf.mxu0
  %1073 = vmatprep.mubr.f32.mxu0 0.0
  %1074 = vmatmul.mubr.f32.gmra.mxu0 %v71
  %v1075 = vpop.f32.mrf.mxu0
  %v1076 = vadd.f32 %v399, %v1075
  %v1077 = vpop.f32.mrf.mxu0
  %1078 = vmatprep.mubr.f32.mxu0 0.0
  %1079 = vmatmul.mubr.f32.gmra.mxu0 %v72
  %v1080 = vpop.f32.mrf.mxu0
  %v1081 = vadd.f32 %v404, %v1080
  %v1082 = vpop.f32.mrf.mxu0
  %1083 = vmatprep.mubr.f32.mxu0 0.0
  %1084 = vmatmul.mubr.f32.gmra.mxu0 %v73
  %v1085 = vpop.f32.mrf.mxu0
  %v1086 = vadd.f32 %v409, %v1085
  %v1087 = vpop.f32.mrf.mxu0
  %1088 = vmatprep.mubr.f32.mxu0 0.0
  %1089 = vmatmul.mubr.f32.gmra.mxu0 %v74
  %v1090 = vpop.f32.mrf.mxu0
  %v1091 = vadd.f32 %v414, %v1090
  %v1092 = vpop.f32.mrf.mxu0
  %1093 = vmatprep.mubr.f32.mxu0 0.0
  %1094 = vmatmul.mubr.f32.gmra.mxu0 %v75
  %v1095 = vpop.f32.mrf.mxu0
  %v1096 = vadd.f32 %v419, %v1095
  %v1097 = vpop.f32.mrf.mxu0
  %1098 = vmatprep.mubr.f32.mxu0 0.0
  %1099 = vmatmul.mubr.f32.gmra.mxu0 %v76
  %v1100 = vpop.f32.mrf.mxu0
  %v1101 = vadd.f32 %v424, %v1100
  %v1102 = vpop.f32.mrf.mxu0
  %1103 = vmatprep.mubr.f32.mxu0 0.0
  %1104 = vmatmul.mubr.f32.gmra.mxu0 %v77
  %v1105 = vpop.f32.mrf.mxu0
  %v1106 = vadd.f32 %v429, %v1105
  %v1107 = vpop.f32.mrf.mxu0
  %1108 = vdwg.mxu0
  %v1109 = vmax.f32 %v1071, 0.0
  %v1110 = vmax.f32 %v1076, 0.0
  %v1111 = vmax.f32 %v1081, 0.0
  %v1112 = vmax.f32 %v1086, 0.0
  %v1113 = vmax.f32 %v1091, 0.0
  %v1114 = vmax.f32 %v1096, 0.0
  %v1115 = vmax.f32 %v1101, 0.0
  %v1116 = vmax.f32 %v1106, 0.0
  %1117 = vmatprep.subr.mxu0 0.0
  %1118 = vmatpush1.msra.mxu0 0.0
  %1119 = vmatprep.subr.mxu0 0.0
  %1120 = vmatpush1.msra.mxu0 0.0
  %1121 = vmatprep.subr.mxu0 0.0
  %1122 = vmatpush1.msra.mxu0 0.0
  %1123 = vmatprep.subr.mxu0 0.0
  %1124 = vmatpush1.msra.mxu0 0.0
  %1125 = vmatprep.subr.mxu0 0.0
  %1126 = vmatpush1.msra.mxu0 0.0
  %1127 = vmatprep.subr.mxu0 0.0
  %1128 = vmatpush1.msra.mxu0 0.0
  %1129 = vmatprep.subr.mxu0 0.0
  %1130 = vmatpush1.msra.mxu0 0.0
  %1131 = vmatprep.subr.mxu0 0.0
  %1132 = vmatpush1.msra.mxu0 0.0
  %1133 = vmatprep.subr.mxu0 0.0
  %1134 = vmatpush1.msra.mxu0 %v1116
  %1135 = vmatprep.subr.mxu0 0.0
  %1136 = vmatpush1.msra.mxu0 %v1115
  %1137 = vmatprep.subr.mxu0 0.0
  %1138 = vmatpush1.msra.mxu0 %v1114
  %1139 = vmatprep.subr.mxu0 0.0
  %1140 = vmatpush1.msra.mxu0 %v1113
  %1141 = vmatprep.subr.mxu0 0.0
  %1142 = vmatpush1.msra.mxu0 %v1112
  %1143 = vmatprep.subr.mxu0 0.0
  %1144 = vmatpush1.msra.mxu0 %v1111
  %1145 = vmatprep.subr.mxu0 0.0
  %1146 = vmatpush1.msra.mxu0 %v1110
  %1147 = vmatprep.subr.mxu0 0.0
  %1148 = vmatpush1.msra.mxu0 %v1109
  %1149 = vmatprep.subr.mxu0 0.0
  %1150 = vmatpush2.msra.mxu0 0.0
  %1151 = vmatprep.subr.mxu0 0.0
  %1152 = vmatpush2.msra.mxu0 0.0
  %1153 = vmatprep.subr.mxu0 0.0
  %1154 = vmatpush2.msra.mxu0 0.0
  %1155 = vmatprep.subr.mxu0 0.0
  %1156 = vmatpush2.msra.mxu0 0.0
  %1157 = vmatprep.subr.mxu0 0.0
  %1158 = vmatpush2.msra.mxu0 0.0
  %1159 = vmatprep.subr.mxu0 0.0
  %1160 = vmatpush2.msra.mxu0 0.0
  %1161 = vmatprep.subr.mxu0 0.0
  %1162 = vmatpush2.msra.mxu0 0.0
  %1163 = vmatprep.subr.mxu0 0.0
  %1164 = vmatpush2.msra.mxu0 0.0
  %1165 = vmatprep.subr.mxu0 0.0
  %1166 = vmatpush2.msra.mxu0 0.0
  %1167 = vmatprep.subr.mxu0 0.0
  %1168 = vmatpush2.msra.mxu0 0.0
  %1169 = vmatprep.subr.mxu0 0.0
  %1170 = vmatpush2.msra.mxu0 0.0
  %1171 = vmatprep.subr.mxu0 0.0
  %1172 = vmatpush2.msra.mxu0 0.0
  %1173 = vmatprep.subr.mxu0 0.0
  %1174 = vmatpush2.msra.mxu0 0.0
  %1175 = vmatprep.subr.mxu0 0.0
  %1176 = vmatpush2.msra.mxu0 0.0
  %1177 = vmatprep.subr.mxu0 0.0
  %1178 = vmatpush2.msra.mxu0 0.0
  %1179 = vmatprep.subr.mxu0 0.0
  %1180 = vmatpush2.msra.mxu0 0.0
  %1181 = vmatprep.mubr.f32.mxu0 0.0
  %1182 = vmatmul.mubr.f32.gmra.mxu0 %v566
  %v1183 = vpop.f32.mrf.mxu0
  %v1184 = vadd.f32 %v547, %v1183
  %v1185 = vpop.f32.mrf.mxu0
  %1186 = vmatprep.mubr.f32.mxu0 0.0
  %1187 = vmatmul.mubr.f32.gmra.mxu0 %v569
  %v1188 = vpop.f32.mrf.mxu0
  %v1189 = vadd.f32 %v552, %v1188
  %v1190 = vpop.f32.mrf.mxu0
  %1191 = vmatprep.mubr.f32.mxu0 0.0
  %1192 = vmatmul.mubr.f32.gmra.mxu0 %v572
  %v1193 = vpop.f32.mrf.mxu0
  %v1194 = vadd.f32 %v557, %v1193
  %v1195 = vpop.f32.mrf.mxu0
  %1196 = vmatprep.mubr.f32.mxu0 0.0
  %1197 = vmatmul.mubr.f32.gmra.mxu0 %v575
  %v1198 = vpop.f32.mrf.mxu0
  %v1199 = vadd.f32 %v562, %v1198
  %v1200 = vpop.f32.mrf.mxu0
  %1201 = vdwg.mxu0
  %v1202 = vmax.f32 %v1184, 0.0
  %v1203 = vmax.f32 %v1189, 0.0
  %v1204 = vmax.f32 %v1194, 0.0
  %v1205 = vmax.f32 %v1199, 0.0
  %1206 = vmatprep.subr.mxu0 0.0
  %1207 = vmatpush1.msra.mxu0 0.0
  %1208 = vmatprep.subr.mxu0 0.0
  %1209 = vmatpush1.msra.mxu0 0.0
  %1210 = vmatprep.subr.mxu0 0.0
  %1211 = vmatpush1.msra.mxu0 0.0
  %1212 = vmatprep.subr.mxu0 0.0
  %1213 = vmatpush1.msra.mxu0 0.0
  %1214 = vmatprep.subr.mxu0 0.0
  %1215 = vmatpush1.msra.mxu0 0.0
  %1216 = vmatprep.subr.mxu0 0.0
  %1217 = vmatpush1.msra.mxu0 0.0
  %1218 = vmatprep.subr.mxu0 0.0
  %1219 = vmatpush1.msra.mxu0 0.0
  %1220 = vmatprep.subr.mxu0 0.0
  %1221 = vmatpush1.msra.mxu0 0.0
  %1222 = vmatprep.subr.mxu0 0.0
  %1223 = vmatpush1.msra.mxu0 0.0
  %1224 = vmatprep.subr.mxu0 0.0
  %1225 = vmatpush1.msra.mxu0 0.0
  %1226 = vmatprep.subr.mxu0 0.0
  %1227 = vmatpush1.msra.mxu0 0.0
  %1228 = vmatprep.subr.mxu0 0.0
  %1229 = vmatpush1.msra.mxu0 0.0
  %1230 = vmatprep.subr.mxu0 0.0
  %1231 = vmatpush1.msra.mxu0 %v1205
  %1232 = vmatprep.subr.mxu0 0.0
  %1233 = vmatpush1.msra.mxu0 %v1204
  %1234 = vmatprep.subr.mxu0 0.0
  %1235 = vmatpush1.msra.mxu0 %v1203
  %1236 = vmatprep.subr.mxu0 0.0
  %1237 = vmatpush1.msra.mxu0 %v1202
  %1238 = vmatprep.subr.mxu0 0.0
  %1239 = vmatpush2.msra.mxu0 0.0
  %1240 = vmatprep.subr.mxu0 0.0
  %1241 = vmatpush2.msra.mxu0 0.0
  %1242 = vmatprep.subr.mxu0 0.0
  %1243 = vmatpush2.msra.mxu0 0.0
  %1244 = vmatprep.subr.mxu0 0.0
  %1245 = vmatpush2.msra.mxu0 0.0
  %1246 = vmatprep.subr.mxu0 0.0
  %1247 = vmatpush2.msra.mxu0 0.0
  %1248 = vmatprep.subr.mxu0 0.0
  %1249 = vmatpush2.msra.mxu0 0.0
  %1250 = vmatprep.subr.mxu0 0.0
  %1251 = vmatpush2.msra.mxu0 0.0
  %1252 = vmatprep.subr.mxu0 0.0
  %1253 = vmatpush2.msra.mxu0 0.0
  %1254 = vmatprep.subr.mxu0 0.0
  %1255 = vmatpush2.msra.mxu0 0.0
  %1256 = vmatprep.subr.mxu0 0.0
  %1257 = vmatpush2.msra.mxu0 0.0
  %1258 = vmatprep.subr.mxu0 0.0
  %1259 = vmatpush2.msra.mxu0 0.0
  %1260 = vmatprep.subr.mxu0 0.0
  %1261 = vmatpush2.msra.mxu0 0.0
  %1262 = vmatprep.subr.mxu0 0.0
  %1263 = vmatpush2.msra.mxu0 0.0
  %1264 = vmatprep.subr.mxu0 0.0
  %1265 = vmatpush2.msra.mxu0 0.0
  %1266 = vmatprep.subr.mxu0 0.0
  %1267 = vmatpush2.msra.mxu0 0.0
  %1268 = vmatprep.subr.mxu0 0.0
  %1269 = vmatpush2.msra.mxu0 0.0
  %1270 = vmatprep.mubr.f32.mxu0 0.0
  %1271 = vmatmul.mubr.f32.gmra.mxu0 %v678
  %v1272 = vpop.f32.mrf.mxu0
  %v1273 = vadd.f32 %v669, %v1272
  %v1274 = vpop.f32.mrf.mxu0
  %1275 = vmatprep.mubr.f32.mxu0 0.0
  %1276 = vmatmul.mubr.f32.gmra.mxu0 %v681
  %v1277 = vpop.f32.mrf.mxu0
  %v1278 = vadd.f32 %v674, %v1277
  %v1279 = vpop.f32.mrf.mxu0
  %1280 = vdwg.mxu0
  %v1281 = vmax.f32 %v1273, 0.0
  %v1282 = vmax.f32 %v1278, 0.0
  %1283 = vmatprep.subr.mxu0 0.0
  %1284 = vmatpush1.msra.mxu0 0.0
  %1285 = vmatprep.subr.mxu0 0.0
  %1286 = vmatpush1.msra.mxu0 0.0
  %1287 = vmatprep.subr.mxu0 0.0
  %1288 = vmatpush1.msra.mxu0 0.0
  %1289 = vmatprep.subr.mxu0 0.0
  %1290 = vmatpush1.msra.mxu0 0.0
  %1291 = vmatprep.subr.mxu0 0.0
  %1292 = vmatpush1.msra.mxu0 0.0
  %1293 = vmatprep.subr.mxu0 0.0
  %1294 = vmatpush1.msra.mxu0 0.0
  %1295 = vmatprep.subr.mxu0 0.0
  %1296 = vmatpush1.msra.mxu0 0.0
  %1297 = vmatprep.subr.mxu0 0.0
  %1298 = vmatpush1.msra.mxu0 0.0
  %1299 = vmatprep.subr.mxu0 0.0
  %1300 = vmatpush1.msra.mxu0 0.0
  %1301 = vmatprep.subr.mxu0 0.0
  %1302 = vmatpush1.msra.mxu0 0.0
  %1303 = vmatprep.subr.mxu0 0.0
  %1304 = vmatpush1.msra.mxu0 0.0
  %1305 = vmatprep.subr.mxu0 0.0
  %1306 = vmatpush1.msra.mxu0 0.0
  %1307 = vmatprep.subr.mxu0 0.0
  %1308 = vmatpush1.msra.mxu0 0.0
  %1309 = vmatprep.subr.mxu0 0.0
  %1310 = vmatpush1.msra.mxu0 0.0
  %1311 = vmatprep.subr.mxu0 0.0
  %1312 = vmatpush1.msra.mxu0 %v1282
  %1313 = vmatprep.subr.mxu0 0.0
  %1314 = vmatpush1.msra.mxu0 %v1281
  %1315 = vmatprep.subr.mxu0 0.0
  %1316 = vmatpush2.msra.mxu0 0.0
  %1317 = vmatprep.subr.mxu0 0.0
  %1318 = vmatpush2.msra.mxu0 0.0
  %1319 = vmatprep.subr.mxu0 0.0
  %1320 = vmatpush2.msra.mxu0 0.0
  %1321 = vmatprep.subr.mxu0 0.0
  %1322 = vmatpush2.msra.mxu0 0.0
  %1323 = vmatprep.subr.mxu0 0.0
  %1324 = vmatpush2.msra.mxu0 0.0
  %1325 = vmatprep.subr.mxu0 0.0
  %1326 = vmatpush2.msra.mxu0 0.0
  %1327 = vmatprep.subr.mxu0 0.0
  %1328 = vmatpush2.msra.mxu0 0.0
  %1329 = vmatprep.subr.mxu0 0.0
  %1330 = vmatpush2.msra.mxu0 0.0
  %1331 = vmatprep.subr.mxu0 0.0
  %1332 = vmatpush2.msra.mxu0 0.0
  %1333 = vmatprep.subr.mxu0 0.0
  %1334 = vmatpush2.msra.mxu0 0.0
  %1335 = vmatprep.subr.mxu0 0.0
  %1336 = vmatpush2.msra.mxu0 0.0
  %1337 = vmatprep.subr.mxu0 0.0
  %1338 = vmatpush2.msra.mxu0 0.0
  %1339 = vmatprep.subr.mxu0 0.0
  %1340 = vmatpush2.msra.mxu0 0.0
  %1341 = vmatprep.subr.mxu0 0.0
  %1342 = vmatpush2.msra.mxu0 0.0
  %1343 = vmatprep.subr.mxu0 0.0
  %1344 = vmatpush2.msra.mxu0 0.0
  %1345 = vmatprep.subr.mxu0 0.0
  %1346 = vmatpush2.msra.mxu0 0.0
  %1347 = vmatprep.mubr.f32.mxu0 0.0
  %1348 = vmatmul.mubr.f32.gmra.mxu0 %v767
  %v1349 = vpop.f32.mrf.mxu0
  %v1350 = vadd.f32 %v763, %v1349
  %v1351 = vpop.f32.mrf.mxu0
  %1352 = vdwg.mxu0
  %s1353 = scalar_lea.vmem %s11, 8
  %1354 = vst.msk [vmem:[%s1353] sm:$0xff] %vm839, %v1350
  // Predicated region
  $region46: #{tpu_custom_call.1} parent=0 // pred_check
    _
  $region47: #{tpu_custom_call.1} parent=0 // pred_check_branch
    %1356 = sbr.rel (0) target = $region49
  $region48: #{tpu_custom_call.1} parent=0 // pred_region
    _
  $region49: #{tpu_custom_call.1} parent=0 // pred_fallthru
    _
  // Predicated region
  $region50: #{tpu_custom_call.1} parent=0 // pred_check
    _
  $region51: #{tpu_custom_call.1} parent=0 // pred_check_branch
    %1358 = sbr.rel (0) target = $region53
  $region52: #{tpu_custom_call.1} parent=0 // pred_region
    _
  $region53: #{tpu_custom_call.1} parent=0 // pred_fallthru
    _

</llo_original>
